<compile_context>
chip_gen: v5e
topology: v5e:2x2
jax: 0.10.0
libtpu: 0.0.40
codegen_flags: <defaults>
</compile_context>

<pallas_src>
import functools

import numpy as np
import jax
import jax.numpy as jnp
from jax.experimental import pallas as pl
from jax.experimental.pallas import tpu as pltpu


# --- trajectory parameter layout (mirrors TrajParamIndex of the reference repo) ---
class TrajParamIndex:
    X = 0; Y = 1; Z = 2
    VX = 3; VY = 4
    AX = 5; AY = 6
    YAW = 7
    LENGTH = 8; WIDTH = 9; HEIGHT = 10
    HAS_OBJECT = 11
    END_OF_INDEX = 12


_ALPHA = 0.25        # focal alpha (matching cost + stand-in obj loss)
_LANE = 128          # TPU lane width; query axis N is padded up to a multiple of this
_PAD_LOGIT = -30.0   # padded HAS_OBJECT logit lanes -> focal term underflows to 0


def _round_up(x, m):
    return ((x + m - 1) // m) * m


# ----------------------------------------------------------------------------- #
# Pallas kernel 1: matching cost matrices for ALL layers  [L, B, M, Npad]
# grid = (L, B) both "parallel"; per step the block is one (M, Npad) cost tile.
# Predictions are channel-major (P, Npad) so every pairwise term is a
# (M,1) x (1,Npad) broadcast, and the L2 cross terms are MXU matmuls.
# Cost weights arrive as a (2,) f32 SMEM array -> no per-epoch recompile.
# ----------------------------------------------------------------------------- #
@functools.lru_cache(maxsize=None)
def _build_cost_matrix_call(L, B, M, P, Np):
    T = TrajParamIndex

    def kernel(w_ref, gt_ref, predt_ref, out_ref):
        cls_w = w_ref[0]                  # SMEM scalars (runtime epoch weights)
        reg_w = w_ref[1]
        g = gt_ref[0]                     # (M, P)   — channels on lanes
        pt = predt_ref[0, 0]              # (P, Np)  — queries on lanes

        # --- center cost: L1 over X..Z, then 1 - exp(-d/30) --------------------
        center = jnp.zeros((M, Np), jnp.float32)
        for d in range(T.X, T.Z + 1):
            center = center + jnp.abs(g[:, d:d + 1] - pt[d:d + 1, :])
        center = 1.0 - jnp.exp(center * (-1.0 / 30.0))

        # --- Euclidean pairwise distances via the MXU ---------------------------
        # d^2 = ||g||^2 + ||p||^2 - 2 g.p ; cross term is one matmul per group.
        ch = jax.lax.broadcasted_iota(jnp.int32, (M, P), 1)

        def l2_dist(lo, hi):
            gm = jnp.where((ch >= lo) & (ch <= hi), g, 0.0)            # (M, P)
            cross = jnp.dot(gm, pt, preferred_element_type=jnp.float32)  # (M, Np) MXU
            g_sq = jnp.sum(gm * gm, axis=1, keepdims=True)             # (M, 1)
            ps = pt[lo:hi + 1, :]
            p_sq = jnp.sum(ps * ps, axis=0, keepdims=True)             # (1, Np)
            return jnp.sqrt(jnp.maximum(g_sq + p_sq - 2.0 * cross, 0.0))

        vel = 0.5 * (1.0 + jnp.tanh(10.0 * (l2_dist(T.VX, T.VY) - 2.0)))
        dim = 0.5 * (1.0 + jnp.tanh(10.0 * (l2_dist(T.LENGTH, T.HEIGHT) - 2.0)))
        reg_cost = 0.7 * center + 0.2 * vel + 0.1 * dim

        # --- focal classification cost (shared exp for sigmoid + softplus) -----
        gt_obj = g[:, T.HAS_OBJECT:T.HAS_OBJECT + 1]      # (M, 1)
        x = pt[T.HAS_OBJECT:T.HAS_OBJECT + 1, :]          # (1, Np) logits
        e = jnp.exp(-jnp.abs(x))
        inv = pl.reciprocal(1.0 + e, approx=True)          # EUP rcp (cost feeds argmin)
        prob = jnp.where(x >= 0.0, inv, e * inv)           # sigmoid(x)
        sp = jnp.maximum(x, 0.0) + jnp.log(1.0 + e)        # softplus(x) = -log(1-prob)
        neg = (1.0 - _ALPHA) * (prob * prob) * sp
        pos = _ALPHA * (1.0 - prob) * (1.0 - prob) * (sp - x)   # softplus(-x)=sp-x
        # reference: torch.where(gt_obj == 1.0, pos_cost, neg_cost)
        cls_cost = jnp.where(gt_obj == 1.0, pos, neg)      # (M, Np)

        out_ref[0, 0, :, :] = cls_cost * cls_w + reg_cost * reg_w

    return jax.jit(pl.pallas_call(
        kernel,
        out_shape=jax.ShapeDtypeStruct((L, B, M, Np), jnp.float32),
        grid=(L, B),
        in_specs=[pl.BlockSpec(memory_space=pltpu.MemorySpace.SMEM),          # weights
                  pl.BlockSpec((1, M, P), lambda l, b: (b, 0, 0)),            # gt
                  pl.BlockSpec((1, 1, P, Np), lambda l, b: (l, b, 0, 0))],    # preds
        out_specs=pl.BlockSpec((1, 1, M, Np), lambda l, b: (l, b, 0, 0)),
        compiler_params=pltpu.CompilerParams(
            dimension_semantics=("parallel", "parallel")),
    ))


# ----------------------------------------------------------------------------- #
# Pallas kernel 2: per-(layer, batch) loss partials, packed into one output
# (L, B, 2, Npad): row 0 = focal-obj lane partials, row 1 = masked-L1 partials.
# Padded HAS_OBJECT logit lanes carry -30, so no in-kernel lane-valid mask needed.
# ----------------------------------------------------------------------------- #
@functools.lru_cache(maxsize=None)
def _build_layer_loss_call(L, B, P, Np):
    T = TrajParamIndex

    def kernel(predt_ref, gtt_ref, mask_ref, out_ref):
        pr = predt_ref[0, 0]     # (P, Np)
        gt = gtt_ref[0, 0]       # (P, Np)  matched gt re-ordered to pred slots, else 0
        msk = mask_ref[0, 0]     # (1, Np)  1.0 on matched prediction slots

        # --- binary focal loss (alpha=0.25, gamma=2) on HAS_OBJECT logits ------
        x = pr[T.HAS_OBJECT:T.HAS_OBJECT + 1, :]           # (1, Np)
        t = gt[T.HAS_OBJECT:T.HAS_OBJECT + 1, :]           # (1, Np), t in {0,1}
        e = jnp.exp(-jnp.abs(x))                           # shared transcendental
        inv = pl.reciprocal(1.0 + e, approx=True)
        prob = jnp.where(x >= 0.0, inv, e * inv)           # sigmoid(x)
        sp = jnp.maximum(x, 0.0) + jnp.log(1.0 + e)        # softplus(x)
        one_minus_pt = t * (1.0 - prob) + (1.0 - t) * prob
        a_t = _ALPHA * t + (1.0 - _ALPHA) * (1.0 - t)
        # -log(p_t) = t*softplus(-x) + (1-t)*softplus(x) = softplus(x) - t*x
        focal = a_t * one_minus_pt * one_minus_pt * (sp - t * x)      # (1, Np)

        # --- masked L1 regression over channels X..HEIGHT only -----------------
        reg = jnp.sum(jnp.abs(pr[:T.HAS_OBJECT, :] - gt[:T.HAS_OBJECT, :]),
                      axis=0, keepdims=True) * msk                    # (1, Np)

        out_ref[0, 0, :, :] = jnp.concatenate([focal, reg], axis=0)   # (2, Np)

    return jax.jit(pl.pallas_call(
        kernel,
        out_shape=jax.ShapeDtypeStruct((L, B, 2, Np), jnp.float32),
        grid=(L, B),
        in_specs=[pl.BlockSpec((1, 1, P, Np), lambda l, b: (l, b, 0, 0)),
                  pl.BlockSpec((1, 1, P, Np), lambda l, b: (l, b, 0, 0)),
                  pl.BlockSpec((1, 1, 1, Np), lambda l, b: (l, b, 0, 0))],
        out_specs=pl.BlockSpec((1, 1, 2, Np), lambda l, b: (l, b, 0, 0)),
        compiler_params=pltpu.CompilerParams(
            dimension_semantics=("parallel", "parallel")),
    ))


# ----------------------------------------------------------------------------- #
# Host-side exact assignment — O(n^3) Jonker-Volgenant / Hungarian (scipy-compatible)
# ----------------------------------------------------------------------------- #
def _linear_sum_assignment(cost):
    # TODO(synk): scipy.optimize.linear_sum_assignment has no Pallas equivalent
    # (data-dependent augmenting paths); exact O(n^3) assignment runs on host.
    cost = np.asarray(cost, dtype=np.float64)
    n, m = cost.shape
    if n == 0 or m == 0:
        return np.zeros((0,), np.int64), np.zeros((0,), np.int64)
    if n > m:
        r, c = _linear_sum_assignment(cost.T)
        order = np.argsort(c)
        return c[order], r[order]
    INF = float("inf")
    u = np.zeros(n + 1, dtype=np.float64)
    v = np.zeros(m + 1, dtype=np.float64)
    p = np.zeros(m + 1, dtype=np.int64)    # p[j]: row matched to column j (0 = none)
    way = np.zeros(m + 1, dtype=np.int64)
    for i in range(1, n + 1):
        p[0] = i
        j0 = 0
        minv = np.full(m + 1, INF, dtype=np.float64)
        used = np.zeros(m + 1, dtype=bool)
        while True:
            used[j0] = True
            i0 = p[j0]
            delta = INF
            j1 = 0
            for j in range(1, m + 1):
                if not used[j]:
                    cur = cost[i0 - 1, j - 1] - u[i0] - v[j]
                    if cur < minv[j]:
                        minv[j] = cur
                        way[j] = j0
                    if minv[j] < delta:
                        delta = minv[j]
                        j1 = j
            for j in range(m + 1):
                if used[j]:
                    u[p[j]] += delta
                    v[j] -= delta
                else:
                    minv[j] -= delta
            j0 = j1
            if p[j0] == 0:
                break
        while True:
            j1 = way[j0]
            p[j0] = p[j1]
            j0 = j1
            if j0 == 0:
                break
    col_of_row = np.zeros(n, dtype=np.int64)
    for j in range(1, m + 1):
        if p[j] != 0:
            col_of_row[p[j] - 1] = j - 1
    return np.arange(n, dtype=np.int64), col_of_row


# ----------------------------------------------------------------------------- #
# Module
# ----------------------------------------------------------------------------- #
class Sparse4DLossWithDAC:
    # TODO(synk): has_object_loss / attribute_loss / regression_loss come from
    # unspecified configs (LOSSES.build); deterministic stand-ins used here:
    # binary focal (alpha=0.25, gamma=2, mean) and L1 (mean). attribute_loss is
    # never used in forward (c_outputs loop is a no-op in the reference).

    def __init__(self, layer_loss_weights):
        self.layer_loss_weights = layer_loss_weights
        self.matching_history = {}
        self.epoch = 0
        self.update_epoch(0)

    def update_epoch(self, epoch):
        self.epoch = epoch
        self.regression_cost_weight = max(0.5, float(np.exp(-epoch / 100) - 0.05))
        self.cls_cost_weight = 1.0 - self.regression_cost_weight

    def reset_matching_history(self):
        self.matching_history = {}

    def get_latest_matching_indices(self, layer_idx):
        if layer_idx not in self.matching_history:
            return []
        return self.matching_history[layer_idx][-1]

    def _save_matching_history(self, layer_idx, indices, step_idx):
        if step_idx != 0:
            return
        self.matching_history.setdefault(layer_idx, [])
        if len(indices) > 0:
            self.matching_history[layer_idx].append(indices)

    def forward(self, gt_trajs, outputs, c_outputs=None, step_idx=0):
        T = TrajParamIndex
        gt_np = np.asarray(gt_trajs, dtype=np.float32)
        B, M, P = gt_np.shape
        L = len(outputs)
        N = outputs[0].shape[1]
        Np = _round_up(max(N, 1), _LANE)
        valid_gt_nbs = (gt_np[..., T.HAS_OBJECT] == 1.0).sum(axis=1)
        losses = {}

        # channel-major, lane-padded prediction stack [L, B, P, Np] — built ONCE
        # and fed to both kernels.
        pred_stack = jnp.stack(outputs).astype(jnp.float32)        # [L, B, N, P]
        pred_t = jnp.transpose(pred_stack, (0, 1, 3, 2))           # [L, B, P, N]
        if Np > N:
            pred_t = jnp.pad(pred_t, ((0, 0), (0, 0), (0, 0), (0, Np - N)))
            # padded HAS_OBJECT logit lanes -> large negative so the focal term in
            # kernel 2 underflows to 0 there (no in-kernel lane-valid mask needed).
            pred_t = pred_t.at[:, :, T.HAS_OBJECT, N:].set(_PAD_LOGIT)

        # epoch-dependent matching-cost weights as runtime SMEM scalars.
        w = jnp.array([self.cls_cost_weight, self.regression_cost_weight],
                      dtype=jnp.float32)
        gt_dev = jnp.asarray(gt_np)

        # Hot path 1: all-layer [L, B, M, Npad] matching costs, one kernel launch.
        cost_call = _build_cost_matrix_call(L, B, M, P, Np)
        cost_all = cost_call(w, gt_dev, pred_t)
        cost_np = np.asarray(cost_all)[..., :N]                    # single D2H sync

        # Host: data-dependent Hungarian matching + gt re-ordering for all layers.
        gt_re_t = np.zeros((L, B, P, Np), dtype=np.float32)        # channel-major
        mask = np.zeros((L, B, 1, Np), dtype=np.float32)
        num_pos = np.zeros((L,), dtype=np.int64)
        for layer_idx in range(L):
            indices = []
            for b in range(B):
                gt_idx, pred_idx = _linear_sum_assignment(cost_np[layer_idx, b])
                k = min(int(valid_gt_nbs[b]), len(gt_idx))
                indices.append((gt_idx[:k], pred_idx[:k]))
            self._save_matching_history(layer_idx, indices, step_idx)
            for b, (gt_idx, pred_idx) in enumerate(indices):
                if len(pred_idx) > 0:
                    gt_re_t[layer_idx, b][:, pred_idx] = gt_np[b, gt_idx].T
                    mask[layer_idx, b, 0, pred_idx] = 1.0
                    num_pos[layer_idx] += len(pred_idx)

        # Hot path 2: focal-obj + masked-L1 partials for all (layer, batch) tiles.
        loss_call = _build_layer_loss_call(L, B, P, Np)
        parts = loss_call(pred_t, jnp.asarray(gt_re_t), jnp.asarray(mask))  # (L,B,2,Np)
        obj_sums = jnp.sum(parts[:, :, 0, :], axis=(1, 2))                  # (L,)
        reg_sums = jnp.sum(parts[:, :, 1, :], axis=(1, 2))                  # (L,)

        n_reg_ch = T.HEIGHT + 1 - T.X   # 11 regression channels
        for layer_idx in range(L):
            lw = float(self.layer_loss_weights[layer_idx])
            losses[f"layer_{layer_idx}_obj_loss"] = (obj_sums[layer_idx] / float(B * N)) * lw
            if num_pos[layer_idx] > 0:
                losses[f"layer_{layer_idx}_reg_loss"] = (
                    reg_sums[layer_idx] / float(int(num_pos[layer_idx]) * n_reg_ch)) * lw

        if c_outputs is not None:
            for layer_idx, pred_trajs in enumerate(c_outputs[1:]):
                pass  # reference implementation is a no-op here

        losses["loss"] = sum(losses.values())
        return losses


if __name__ == "__main__":
    key = jax.random.PRNGKey(0)
    B, M, N, P = 2, 8, 8, TrajParamIndex.END_OF_INDEX
    num_layers = 3

    k_gt, *k_pred = jax.random.split(key, 1 + num_layers)
    gt = jax.random.normal(k_gt, (B, M, P), dtype=jnp.float32) * 5.0
    # valid gts first, padding (HAS_OBJECT == 0) after — as assumed by the reference
    valid = jnp.array([[1.0] * 5 + [0.0] * 3,
                       [1.0] * 3 + [0.0] * 5], dtype=jnp.float32)
    gt = gt.at[..., TrajParamIndex.HAS_OBJECT].set(valid)

    outputs = [jax.random.normal(k, (B, N, P), dtype=jnp.float32) * 5.0 for k in k_pred]

    loss_mod = Sparse4DLossWithDAC(layer_loss_weights=[0.2, 0.5, 1.0])
    loss_mod.update_epoch(0)
    losses = loss_mod.forward(gt, outputs, c_outputs=None, step_idx=0)
    jax.block_until_ready(losses["loss"])
    print("KERNEL_OK")
</pallas_src>

<mosaic_0001>
module attributes {stable_mosaic.version = 11 : i64} {
  func.func @kernel(%arg0: i32, %arg1: i32, %arg2: memref<2xf32, #tpu.memory_space<smem>>, %arg3: memref<1x8x12xf32, #tpu.memory_space<vmem>>, %arg4: memref<1x1x12x128xf32, #tpu.memory_space<vmem>>, %arg5: memref<1x1x8x128xf32, #tpu.memory_space<vmem>>) attributes {dimension_semantics = [#tpu.dimension_semantics<parallel>, #tpu.dimension_semantics<parallel>], iteration_bounds = array<i64: 3, 2>, scalar_prefetch = 0 : i64, scratch_operands = 0 : i64, tpu.core_type = #tpu.core_type<tc>, window_params = [{transform_indices = @transform_0, window_bounds = array<i64: 2>}, {transform_indices = @transform_1, window_bounds = array<i64: 1, 8, 12>}, {transform_indices = @transform_2, window_bounds = array<i64: 1, 1, 12, 128>}, {transform_indices = @transform_3, window_bounds = array<i64: 1, 1, 8, 128>}]} {
    %c0 = arith.constant 0 : index
    %0 = memref.load %arg2[%c0] : memref<2xf32, #tpu.memory_space<smem>>
    %c1 = arith.constant 1 : index
    %1 = memref.load %arg2[%c1] : memref<2xf32, #tpu.memory_space<smem>>
    %c0_0 = arith.constant 0 : index
    %c0_1 = arith.constant 0 : index
    %c0_2 = arith.constant 0 : index
    %2 = vector.load %arg3[%c0_0, %c0_1, %c0_2] : memref<1x8x12xf32, #tpu.memory_space<vmem>>, vector<1x8x12xf32>
    %3 = vector.shape_cast %2 : vector<1x8x12xf32> to vector<8x12xf32>
    %c0_3 = arith.constant 0 : index
    %c0_4 = arith.constant 0 : index
    %c0_5 = arith.constant 0 : index
    %c0_6 = arith.constant 0 : index
    %4 = vector.load %arg4[%c0_3, %c0_4, %c0_5, %c0_6] : memref<1x1x12x128xf32, #tpu.memory_space<vmem>>, vector<1x1x12x128xf32>
    %5 = vector.shape_cast %4 : vector<1x1x12x128xf32> to vector<12x128xf32>
    %cst = arith.constant 0.000000e+00 : f32
    %6 = vector.broadcast %cst : f32 to vector<8x128xf32>
    %7 = vector.extract_strided_slice %3 {offsets = [0, 0], sizes = [8, 1], strides = [1, 1]} : vector<8x12xf32> to vector<8x1xf32>
    %8 = vector.extract_strided_slice %5 {offsets = [0, 0], sizes = [1, 128], strides = [1, 1]} : vector<12x128xf32> to vector<1x128xf32>
    %9 = vector.broadcast %7 : vector<8x1xf32> to vector<8x128xf32>
    %10 = vector.broadcast %8 : vector<1x128xf32> to vector<8x128xf32>
    %11 = arith.subf %9, %10 : vector<8x128xf32>
    %12 = math.absf %11 : vector<8x128xf32>
    %13 = arith.addf %6, %12 : vector<8x128xf32>
    %14 = vector.extract_strided_slice %3 {offsets = [0, 1], sizes = [8, 1], strides = [1, 1]} : vector<8x12xf32> to vector<8x1xf32>
    %15 = vector.extract_strided_slice %5 {offsets = [1, 0], sizes = [1, 128], strides = [1, 1]} : vector<12x128xf32> to vector<1x128xf32>
    %16 = vector.broadcast %14 : vector<8x1xf32> to vector<8x128xf32>
    %17 = vector.broadcast %15 : vector<1x128xf32> to vector<8x128xf32>
    %18 = arith.subf %16, %17 : vector<8x128xf32>
    %19 = math.absf %18 : vector<8x128xf32>
    %20 = arith.addf %13, %19 : vector<8x128xf32>
    %21 = vector.extract_strided_slice %3 {offsets = [0, 2], sizes = [8, 1], strides = [1, 1]} : vector<8x12xf32> to vector<8x1xf32>
    %22 = vector.extract_strided_slice %5 {offsets = [2, 0], sizes = [1, 128], strides = [1, 1]} : vector<12x128xf32> to vector<1x128xf32>
    %23 = vector.broadcast %21 : vector<8x1xf32> to vector<8x128xf32>
    %24 = vector.broadcast %22 : vector<1x128xf32> to vector<8x128xf32>
    %25 = arith.subf %23, %24 : vector<8x128xf32>
    %26 = math.absf %25 : vector<8x128xf32>
    %27 = arith.addf %20, %26 : vector<8x128xf32>
    %cst_7 = arith.constant -0.0333333351 : f32
    %28 = vector.broadcast %cst_7 : f32 to vector<8x128xf32>
    %29 = arith.mulf %27, %28 : vector<8x128xf32>
    %30 = math.exp %29 : vector<8x128xf32>
    %cst_8 = arith.constant 1.000000e+00 : f32
    %31 = vector.broadcast %cst_8 : f32 to vector<8x128xf32>
    %32 = arith.subf %31, %30 : vector<8x128xf32>
    %33 = tpu.iota {dimensions = array<i32: 1>} : vector<8x12xi32>
    %c3_i32 = arith.constant 3 : i32
    %34 = vector.broadcast %c3_i32 : i32 to vector<8x12xi32>
    %35 = arith.cmpi sge, %33, %34 : vector<8x12xi32>
    %c4_i32 = arith.constant 4 : i32
    %36 = vector.broadcast %c4_i32 : i32 to vector<8x12xi32>
    %37 = arith.cmpi sle, %33, %36 : vector<8x12xi32>
    %38 = arith.andi %35, %37 : vector<8x12xi1>
    %cst_9 = arith.constant 0.000000e+00 : f32
    %39 = vector.broadcast %cst_9 : f32 to vector<8x12xf32>
    %40 = arith.select %38, %3, %39 : vector<8x12xi1>, vector<8x12xf32>
    %cst_10 = arith.constant dense<0.000000e+00> : vector<8x128xf32>
    %41 = tpu.matmul %40, %5, %cst_10 {dimension_numbers = #tpu.dot_dimension_numbers<[1], [0], [0], [1], [0, 0, 1, 1], [], []>} : vector<8x12xf32>, vector<12x128xf32>, vector<8x128xf32> -> vector<8x128xf32>
    %42 = arith.mulf %40, %40 : vector<8x12xf32>
    %cst_11 = arith.constant dense<0.000000e+00> : vector<8xf32>
    %43 = vector.multi_reduction <add>, %42, %cst_11 [1] : vector<8x12xf32> to vector<8xf32>
    %44 = vector.shape_cast %43 : vector<8xf32> to vector<8x1xf32>
    %45 = vector.extract_strided_slice %5 {offsets = [3, 0], sizes = [2, 128], strides = [1, 1]} : vector<12x128xf32> to vector<2x128xf32>
    %46 = arith.mulf %45, %45 : vector<2x128xf32>
    %cst_12 = arith.constant dense<0.000000e+00> : vector<128xf32>
    %47 = vector.multi_reduction <add>, %46, %cst_12 [0] : vector<2x128xf32> to vector<128xf32>
    %48 = vector.shape_cast %47 : vector<128xf32> to vector<1x128xf32>
    %49 = vector.broadcast %44 : vector<8x1xf32> to vector<8x128xf32>
    %50 = vector.broadcast %48 : vector<1x128xf32> to vector<8x128xf32>
    %51 = arith.addf %49, %50 : vector<8x128xf32>
    %cst_13 = arith.constant 2.000000e+00 : f32
    %52 = vector.broadcast %cst_13 : f32 to vector<8x128xf32>
    %53 = arith.mulf %52, %41 : vector<8x128xf32>
    %54 = arith.subf %51, %53 : vector<8x128xf32>
    %cst_14 = arith.constant 0.000000e+00 : f32
    %55 = vector.broadcast %cst_14 : f32 to vector<8x128xf32>
    %56 = arith.maximumf %54, %55 : vector<8x128xf32>
    %57 = math.sqrt %56 : vector<8x128xf32>
    %cst_15 = arith.constant 2.000000e+00 : f32
    %58 = vector.broadcast %cst_15 : f32 to vector<8x128xf32>
    %59 = arith.subf %57, %58 : vector<8x128xf32>
    %cst_16 = arith.constant 1.000000e+01 : f32
    %60 = vector.broadcast %cst_16 : f32 to vector<8x128xf32>
    %61 = arith.mulf %60, %59 : vector<8x128xf32>
    %62 = math.tanh %61 : vector<8x128xf32>
    %cst_17 = arith.constant 1.000000e+00 : f32
    %63 = vector.broadcast %cst_17 : f32 to vector<8x128xf32>
    %64 = arith.addf %63, %62 : vector<8x128xf32>
    %cst_18 = arith.constant 5.000000e-01 : f32
    %65 = vector.broadcast %cst_18 : f32 to vector<8x128xf32>
    %66 = arith.mulf %65, %64 : vector<8x128xf32>
    %c8_i32 = arith.constant 8 : i32
    %67 = vector.broadcast %c8_i32 : i32 to vector<8x12xi32>
    %68 = arith.cmpi sge, %33, %67 : vector<8x12xi32>
    %c10_i32 = arith.constant 10 : i32
    %69 = vector.broadcast %c10_i32 : i32 to vector<8x12xi32>
    %70 = arith.cmpi sle, %33, %69 : vector<8x12xi32>
    %71 = arith.andi %68, %70 : vector<8x12xi1>
    %cst_19 = arith.constant 0.000000e+00 : f32
    %72 = vector.broadcast %cst_19 : f32 to vector<8x12xf32>
    %73 = arith.select %71, %3, %72 : vector<8x12xi1>, vector<8x12xf32>
    %cst_20 = arith.constant dense<0.000000e+00> : vector<8x128xf32>
    %74 = tpu.matmul %73, %5, %cst_20 {dimension_numbers = #tpu.dot_dimension_numbers<[1], [0], [0], [1], [0, 0, 1, 1], [], []>} : vector<8x12xf32>, vector<12x128xf32>, vector<8x128xf32> -> vector<8x128xf32>
    %75 = arith.mulf %73, %73 : vector<8x12xf32>
    %cst_21 = arith.constant dense<0.000000e+00> : vector<8xf32>
    %76 = vector.multi_reduction <add>, %75, %cst_21 [1] : vector<8x12xf32> to vector<8xf32>
    %77 = vector.shape_cast %76 : vector<8xf32> to vector<8x1xf32>
    %78 = vector.extract_strided_slice %5 {offsets = [8, 0], sizes = [3, 128], strides = [1, 1]} : vector<12x128xf32> to vector<3x128xf32>
    %79 = arith.mulf %78, %78 : vector<3x128xf32>
    %cst_22 = arith.constant dense<0.000000e+00> : vector<128xf32>
    %80 = vector.multi_reduction <add>, %79, %cst_22 [0] : vector<3x128xf32> to vector<128xf32>
    %81 = vector.shape_cast %80 : vector<128xf32> to vector<1x128xf32>
    %82 = vector.broadcast %77 : vector<8x1xf32> to vector<8x128xf32>
    %83 = vector.broadcast %81 : vector<1x128xf32> to vector<8x128xf32>
    %84 = arith.addf %82, %83 : vector<8x128xf32>
    %cst_23 = arith.constant 2.000000e+00 : f32
    %85 = vector.broadcast %cst_23 : f32 to vector<8x128xf32>
    %86 = arith.mulf %85, %74 : vector<8x128xf32>
    %87 = arith.subf %84, %86 : vector<8x128xf32>
    %cst_24 = arith.constant 0.000000e+00 : f32
    %88 = vector.broadcast %cst_24 : f32 to vector<8x128xf32>
    %89 = arith.maximumf %87, %88 : vector<8x128xf32>
    %90 = math.sqrt %89 : vector<8x128xf32>
    %cst_25 = arith.constant 2.000000e+00 : f32
    %91 = vector.broadcast %cst_25 : f32 to vector<8x128xf32>
    %92 = arith.subf %90, %91 : vector<8x128xf32>
    %cst_26 = arith.constant 1.000000e+01 : f32
    %93 = vector.broadcast %cst_26 : f32 to vector<8x128xf32>
    %94 = arith.mulf %93, %92 : vector<8x128xf32>
    %95 = math.tanh %94 : vector<8x128xf32>
    %cst_27 = arith.constant 1.000000e+00 : f32
    %96 = vector.broadcast %cst_27 : f32 to vector<8x128xf32>
    %97 = arith.addf %96, %95 : vector<8x128xf32>
    %cst_28 = arith.constant 5.000000e-01 : f32
    %98 = vector.broadcast %cst_28 : f32 to vector<8x128xf32>
    %99 = arith.mulf %98, %97 : vector<8x128xf32>
    %cst_29 = arith.constant 0.699999988 : f32
    %100 = vector.broadcast %cst_29 : f32 to vector<8x128xf32>
    %101 = arith.mulf %100, %32 : vector<8x128xf32>
    %cst_30 = arith.constant 2.000000e-01 : f32
    %102 = vector.broadcast %cst_30 : f32 to vector<8x128xf32>
    %103 = arith.mulf %102, %66 : vector<8x128xf32>
    %104 = arith.addf %101, %103 : vector<8x128xf32>
    %cst_31 = arith.constant 1.000000e-01 : f32
    %105 = vector.broadcast %cst_31 : f32 to vector<8x128xf32>
    %106 = arith.mulf %105, %99 : vector<8x128xf32>
    %107 = arith.addf %104, %106 : vector<8x128xf32>
    %108 = vector.extract_strided_slice %3 {offsets = [0, 11], sizes = [8, 1], strides = [1, 1]} : vector<8x12xf32> to vector<8x1xf32>
    %109 = vector.extract_strided_slice %5 {offsets = [11, 0], sizes = [1, 128], strides = [1, 1]} : vector<12x128xf32> to vector<1x128xf32>
    %110 = math.absf %109 : vector<1x128xf32>
    %cst_32 = arith.constant 0.000000e+00 : f32
    %111 = vector.broadcast %cst_32 : f32 to vector<1x128xf32>
    %112 = arith.subf %111, %110 : vector<1x128xf32>
    %113 = math.exp %112 : vector<1x128xf32>
    %cst_33 = arith.constant 1.000000e+00 : f32
    %114 = vector.broadcast %cst_33 : f32 to vector<1x128xf32>
    %115 = arith.addf %114, %113 : vector<1x128xf32>
    %116 = tpu.reciprocal %115 {approx = true} : vector<1x128xf32> -> vector<1x128xf32>
    %cst_34 = arith.constant 0.000000e+00 : f32
    %117 = vector.broadcast %cst_34 : f32 to vector<1x128xf32>
    %118 = arith.cmpf oge, %109, %117 : vector<1x128xf32>
    %119 = arith.mulf %113, %116 : vector<1x128xf32>
    %120 = arith.select %118, %116, %119 : vector<1x128xi1>, vector<1x128xf32>
    %cst_35 = arith.constant 0.000000e+00 : f32
    %121 = vector.broadcast %cst_35 : f32 to vector<1x128xf32>
    %122 = arith.maximumf %109, %121 : vector<1x128xf32>
    %cst_36 = arith.constant 1.000000e+00 : f32
    %123 = vector.broadcast %cst_36 : f32 to vector<1x128xf32>
    %124 = arith.addf %123, %113 : vector<1x128xf32>
    %125 = math.log %124 : vector<1x128xf32>
    %126 = arith.addf %122, %125 : vector<1x128xf32>
    %127 = arith.mulf %120, %120 : vector<1x128xf32>
    %cst_37 = arith.constant 7.500000e-01 : f32
    %128 = vector.broadcast %cst_37 : f32 to vector<1x128xf32>
    %129 = arith.mulf %128, %127 : vector<1x128xf32>
    %130 = arith.mulf %129, %126 : vector<1x128xf32>
    %cst_38 = arith.constant 1.000000e+00 : f32
    %131 = vector.broadcast %cst_38 : f32 to vector<1x128xf32>
    %132 = arith.subf %131, %120 : vector<1x128xf32>
    %cst_39 = arith.constant 2.500000e-01 : f32
    %133 = vector.broadcast %cst_39 : f32 to vector<1x128xf32>
    %134 = arith.mulf %133, %132 : vector<1x128xf32>
    %cst_40 = arith.constant 1.000000e+00 : f32
    %135 = vector.broadcast %cst_40 : f32 to vector<1x128xf32>
    %136 = arith.subf %135, %120 : vector<1x128xf32>
    %137 = arith.mulf %134, %136 : vector<1x128xf32>
    %138 = arith.subf %126, %109 : vector<1x128xf32>
    %139 = arith.mulf %137, %138 : vector<1x128xf32>
    %cst_41 = arith.constant 1.000000e+00 : f32
    %140 = vector.broadcast %cst_41 : f32 to vector<8x1xf32>
    %141 = arith.cmpf oeq, %108, %140 : vector<8x1xf32>
    %142 = vector.shape_cast %141 : vector<8x1xi1> to vector<8x1xi1>
    %143 = vector.broadcast %142 : vector<8x1xi1> to vector<8x128xi1>
    %144 = vector.shape_cast %139 : vector<1x128xf32> to vector<1x128xf32>
    %145 = vector.broadcast %144 : vector<1x128xf32> to vector<8x128xf32>
    %146 = vector.shape_cast %130 : vector<1x128xf32> to vector<1x128xf32>
    %147 = vector.broadcast %146 : vector<1x128xf32> to vector<8x128xf32>
    %148 = arith.select %143, %145, %147 : vector<8x128xi1>, vector<8x128xf32>
    %149 = vector.broadcast %0 : f32 to vector<8x128xf32>
    %150 = arith.mulf %148, %149 : vector<8x128xf32>
    %151 = vector.broadcast %1 : f32 to vector<8x128xf32>
    %152 = arith.mulf %107, %151 : vector<8x128xf32>
    %153 = arith.addf %150, %152 : vector<8x128xf32>
    %c0_42 = arith.constant 0 : index
    %c0_43 = arith.constant 0 : index
    %c0_44 = arith.constant 0 : index
    %c0_45 = arith.constant 0 : index
    %154 = vector.load %arg5[%c0_42, %c0_43, %c0_44, %c0_45] : memref<1x1x8x128xf32, #tpu.memory_space<vmem>>, vector<1x1x8x128xf32>
    %155 = vector.shape_cast %154 : vector<1x1x8x128xf32> to vector<8x128xf32>
    %156 = vector.shape_cast %153 : vector<8x128xf32> to vector<1x1x8x128xf32>
    tpu.vector_store %arg5[%c0_42, %c0_43, %c0_44, %c0_45], %156 {strides = array<i32>} : memref<1x1x8x128xf32, #tpu.memory_space<vmem>>, vector<1x1x8x128xf32>,
    return
  }
  func.func @transform_0(%arg0: i32, %arg1: i32) -> i32 {
    %c0_i32 = arith.constant 0 : i32
    %c0_i32_0 = arith.constant 0 : i32
    return %c0_i32 : i32
  }
  func.func @transform_1(%arg0: i32, %arg1: i32) -> (i32, i32, i32) {
    %c0_i32 = arith.constant 0 : i32
    %c0_i32_0 = arith.constant 0 : i32
    %c0_i32_1 = arith.constant 0 : i32
    return %arg1, %c0_i32, %c0_i32_0 : i32, i32, i32
  }
  func.func @transform_2(%arg0: i32, %arg1: i32) -> (i32, i32, i32, i32) {
    %c0_i32 = arith.constant 0 : i32
    %c0_i32_0 = arith.constant 0 : i32
    %c0_i32_1 = arith.constant 0 : i32
    return %arg0, %arg1, %c0_i32, %c0_i32_0 : i32, i32, i32, i32
  }
  func.func @transform_3(%arg0: i32, %arg1: i32) -> (i32, i32, i32, i32) {
    %c0_i32 = arith.constant 0 : i32
    %c0_i32_0 = arith.constant 0 : i32
    %c0_i32_1 = arith.constant 0 : i32
    return %arg0, %arg1, %c0_i32, %c0_i32_0 : i32, i32, i32, i32
  }
}

</mosaic_0001>

<llo_original>
// kernel: tpu_custom_call.1
$region0: #{tpu_custom_call.1}
  #allocation0 [shape = 'u32[]', space=smem, size = 0x4, offset = 0x4, fixed_abs, tag = 'smem constant byte address 0x4 - core index']
  #allocation1 [shape = 'u32[72,128]{1,0:T(1,128)}', space=vmem, size = 0x9000, scoped, tag = 'internal scratch']
  %s0 = inlined_call_operand.vmem [shape: f32[2], index: 0, kind: input, shape index: {}]
  %s1 = inlined_call_operand.vmem [shape: f32[2,8,12], index: 1, kind: input, shape index: {}]
  %s2 = inlined_call_operand.vmem [shape: f32[3,2,12,128], index: 2, kind: input, shape index: {}]
  %s3 = inlined_call_operand.hbm [shape: f32[3,2,8,128], index: 3, kind: output, shape index: {}]
  %s4 = sld [smem:[#allocation0]]
  $region49: #{tpu_custom_call.1} parent=0
    _
  %s6 = ssub.s32 1, %s4
  %s7 = scalar_select 0, %s6, %s4
  $region1: #{tpu_custom_call.1} parent=0
    #allocation2 [shape = 'u8[512]{0}', space=smem, size = 0x200, scoped, tag = 'input window, operand 0, single buffered']
    #allocation3 [shape = 's32[2]{0}', space=sflag, size = 0x8, scoped, tag = 'scoped memory for tpu_custom_call.1']
    #allocation4 [shape = 's32[2]{0}', space=sflag, size = 0x8, scoped, tag = 'scoped memory for tpu_custom_call.1']
    #allocation5 [shape = 'u8[8192]{0}', space=vmem, size = 0x2000, scoped, tag = 'output window, operand 0']
    %8 = vsyncpa [#allocation4], 0
    %9 = vsyncpa [#allocation3], 0
    %s10 = scalar_lea.sflag [#allocation3], 1
    %11 = vsyncpa %s10, 0
    loop: start=0, step=1, limit=8
    $region2: #{tpu_custom_call.1} parent=1 // loop_pre_header
      _
    $region3: #{tpu_custom_call.1} parent=1 // loop_header
      %s13 = sphi 0, %s17
      %p14 = scmp.ge.s32.totalorder %s13, 8
      %s20 = sphi 0, %s32
      %s21 = sphi 0, %s28
      %s22 = sphi 0, %s20
      %s23 = sphi 0, %s21
      %s24 = sphi 0, %s22
      %s25 = sphi 0, %s23
      %s33 = sphi 0, %s33
      %s35 = sphi 0, %s33
      %s36 = sphi 0, %s35
      %s50 = sphi 0, %s36
      %s56 = sphi 0, %s58
      %s59 = sphi 0, %s56
      %s60 = sphi 0, %s59
      %s76 = sphi 0, %s60
      %s84 = sphi 0, %s86
      %s87 = sphi 0, %s84
      %s88 = sphi 0, %s87
      %s104 = sphi 0, %s88
      %s112 = sphi 0, %s114
      %s115 = sphi 0, %s112
      %s116 = sphi 0, %s115
      %s132 = sphi 0, %s116
    $region4: #{tpu_custom_call.1} parent=1 // loop_header_branch
      %16 = sbr.rel (%p14) target = $region8
    $region5: #{tpu_custom_call.1} parent=1 // loop_body
      %s18 = ssub.s32 %s13, 1
      %s19 = ssub.s32 %s13, 2
      %s26 = sadd.s32 1, %s21
      %p27 = scmp.ge.s32.totalorder %s26, 2
      %s28 = scalar_select %p27, 0, %s26
      %s29 = sadd.s32 1, %s20
      %s30 = scalar_select %p27, %s29, %s20
      %p31 = scmp.ge.s32.totalorder %s30, 3
      %s32 = scalar_select %p31, 0, %s30
      %s34 = sadd.s32 %s33, 1
      %p37 = scmp.eq.s32.totalorder %s13, 5
      %p38 = scmp.ne.s32.totalorder %s33, %s35
      %p39 = scmp.eq.s32.totalorder %s13, 0
      %p40 = por %p38, %p39
      %p41 = scmp.ne.s32.totalorder %s33, %s35
      %p42 = scmp.eq.s32.totalorder %s18, 5
      %p43 = por %p41, %p42
      %p44 = scmp.ne.s32.totalorder %s35, %s36
      %p45 = scmp.eq.s32.totalorder %s18, 0
      %p46 = por %p44, %p45
      %p47 = scmp.ne.s32.totalorder %s35, %s36
      %p48 = scmp.eq.s32.totalorder %s19, 5
      %p49 = por %p47, %p48
      %p51 = scmp.ne.s32.totalorder %s36, %s50
      %p52 = scmp.eq.s32.totalorder %s19, 0
      %p53 = por %p51, %p52
      %s54 = ssub.s32 %s21, %s28
      %p55 = scmp.eq.s32.totalorder %s54, 0
      %s57 = sadd.s32 %s56, 1
      %s58 = scalar_select %p55, %s56, %s57
      %p61 = pneg %p55
      %p62 = scmp.eq.s32.totalorder %s13, 5
      %p63 = por %p61, %p62
      %p64 = scmp.ne.s32.totalorder %s56, %s59
      %p65 = scmp.eq.s32.totalorder %s13, 0
      %p66 = por %p64, %p65
      %p67 = scmp.ne.s32.totalorder %s56, %s59
      %p68 = scmp.eq.s32.totalorder %s18, 5
      %p69 = por %p67, %p68
      %p70 = scmp.ne.s32.totalorder %s59, %s60
      %p71 = scmp.eq.s32.totalorder %s18, 0
      %p72 = por %p70, %p71
      %p73 = scmp.ne.s32.totalorder %s59, %s60
      %p74 = scmp.eq.s32.totalorder %s19, 5
      %p75 = por %p73, %p74
      %p77 = scmp.ne.s32.totalorder %s60, %s76
      %p78 = scmp.eq.s32.totalorder %s19, 0
      %p79 = por %p77, %p78
      %s80 = ssub.s32 %s20, %s32
      %s81 = ssub.s32 %s21, %s28
      %s82 = sor.u32 %s80, %s81
      %p83 = scmp.eq.s32.totalorder %s82, 0
      %s85 = sadd.s32 %s84, 1
      %s86 = scalar_select %p83, %s84, %s85
      %p89 = pneg %p83
      %p90 = scmp.eq.s32.totalorder %s13, 5
      %p91 = por %p89, %p90
      %p92 = scmp.ne.s32.totalorder %s84, %s87
      %p93 = scmp.eq.s32.totalorder %s13, 0
      %p94 = por %p92, %p93
      %p95 = scmp.ne.s32.totalorder %s84, %s87
      %p96 = scmp.eq.s32.totalorder %s18, 5
      %p97 = por %p95, %p96
      %p98 = scmp.ne.s32.totalorder %s87, %s88
      %p99 = scmp.eq.s32.totalorder %s18, 0
      %p100 = por %p98, %p99
      %p101 = scmp.ne.s32.totalorder %s87, %s88
      %p102 = scmp.eq.s32.totalorder %s19, 5
      %p103 = por %p101, %p102
      %p105 = scmp.ne.s32.totalorder %s88, %s104
      %p106 = scmp.eq.s32.totalorder %s19, 0
      %p107 = por %p105, %p106
      %s108 = ssub.s32 %s20, %s32
      %s109 = ssub.s32 %s21, %s28
      %s110 = sor.u32 %s108, %s109
      %p111 = scmp.eq.s32.totalorder %s110, 0
      %s113 = sadd.s32 %s112, 1
      %s114 = scalar_select %p111, %s112, %s113
      %p117 = pneg %p111
      %p118 = scmp.eq.s32.totalorder %s13, 5
      %p119 = por %p117, %p118
      %p120 = scmp.ne.s32.totalorder %s112, %s115
      %p121 = scmp.eq.s32.totalorder %s13, 0
      %p122 = por %p120, %p121
      %p123 = scmp.ne.s32.totalorder %s112, %s115
      %p124 = scmp.eq.s32.totalorder %s18, 5
      %p125 = por %p123, %p124
      %p126 = scmp.ne.s32.totalorder %s115, %s116
      %p127 = scmp.eq.s32.totalorder %s18, 0
      %p128 = por %p126, %p127
      %p129 = scmp.ne.s32.totalorder %s115, %s116
      %p130 = scmp.eq.s32.totalorder %s19, 5
      %p131 = por %p129, %p130
      %p133 = scmp.ne.s32.totalorder %s116, %s132
      %p134 = scmp.eq.s32.totalorder %s19, 0
      %p135 = por %p133, %p134
      %p136 = scmp.le.s32.totalorder 1, %s13
      %p137 = scmp.lt.s32.totalorder %s13, 7
      %p138 = pnand %p136, %p137
      %p139 = pneg %p138
      // Predicated region
      $region9: #{tpu_custom_call.1} parent=5 // pred_check
        _
      $region10: #{tpu_custom_call.1} parent=5 // pred_check_branch
        %141 = sbr.rel (%p138) target = $region12
      $region11: #{tpu_custom_call.1} parent=5 // pred_region
        %s142 = ssub.s32 %s13, 1
        // Predicated region
        $region13: #{tpu_custom_call.1} parent=11 // pred_check
          %p143 = pneg %p46
        $region14: #{tpu_custom_call.1} parent=11 // pred_check_branch
          %145 = sbr.rel (%p143) target = $region16
        $region15: #{tpu_custom_call.1} parent=11 // pred_region
          %147 = vsyncadd [#allocation4], 0
          %s149 = sshll.u32 %s0, 4
          %s150 = int_to_ptr.vmem [resolvable:$true] %s149
          %152 = dma.vmem_to_smem %s150, 16, [#allocation2], [#allocation4]
        $region16: #{tpu_custom_call.1} parent=11 // pred_fallthru
          _
      $region12: #{tpu_custom_call.1} parent=5 // pred_fallthru
        _
      %p153 = scmp.lt.s32.totalorder %s13, 6
      // Predicated region
      $region17: #{tpu_custom_call.1} parent=5 // pred_check
        %p154 = pneg %p153
      $region18: #{tpu_custom_call.1} parent=5 // pred_check_branch
        %156 = sbr.rel (%p154) target = $region20
      $region19: #{tpu_custom_call.1} parent=5 // pred_region
        // Predicated region
        $region21: #{tpu_custom_call.1} parent=19 // pred_check
          %p157 = pneg %p66
        $region22: #{tpu_custom_call.1} parent=19 // pred_check_branch
          %159 = sbr.rel (%p157) target = $region24
        $region23: #{tpu_custom_call.1} parent=19 // pred_region
          %p160 = scmp.lt.s32.totalorder %s21, 1
          %s161 = scalar_select %p160, %s21, 1
          %s162 = smul.addr %s161, 8
          %s163 = scalar_lea.vmem %s1, %s162
        $region24: #{tpu_custom_call.1} parent=19 // pred_fallthru
          _
        // Predicated region
        $region25: #{tpu_custom_call.1} parent=19 // pred_check
          %p164 = pneg %p94
        $region26: #{tpu_custom_call.1} parent=19 // pred_check_branch
          %166 = sbr.rel (%p164) target = $region28
        $region27: #{tpu_custom_call.1} parent=19 // pred_region
          %p167 = scmp.lt.s32.totalorder %s20, 2
          %s168 = scalar_select %p167, %s20, 2
          %p169 = scmp.lt.s32.totalorder %s21, 1
          %s170 = scalar_select %p169, %s21, 1
          %s171 = smul.addr %s170, 2
          %s172 = smul.addr %s168, 4
          %s173 = sadd.s32 %s171, %s172
          %s174 = smul.addr %s173, 8
          %s175 = scalar_lea.vmem %s2, %s174
        $region28: #{tpu_custom_call.1} parent=19 // pred_fallthru
          _
      $region20: #{tpu_custom_call.1} parent=5 // pred_fallthru
        _
      %p176 = scmp.le.s32.totalorder 1, %s13
      %p177 = scmp.lt.s32.totalorder %s13, 7
      %p178 = pnand %p176, %p177
      %p179 = pneg %p178
      // Predicated region
      $region29: #{tpu_custom_call.1} parent=5 // pred_check
        _
      $region30: #{tpu_custom_call.1} parent=5 // pred_check_branch
        %181 = sbr.rel (%p178) target = $region32
      $region31: #{tpu_custom_call.1} parent=5 // pred_region
        %s182 = ssub.s32 %s13, 1
        // Predicated region
        $region33: #{tpu_custom_call.1} parent=31 // pred_check
          %p183 = pneg %p46
        $region34: #{tpu_custom_call.1} parent=31 // pred_check_branch
          %185 = sbr.rel (%p183) target = $region36
        $region35: #{tpu_custom_call.1} parent=31 // pred_region
          %187 = dma.done [#allocation4], 16
        $region36: #{tpu_custom_call.1} parent=31 // pred_fallthru
          _
        %188 = sfence
        %p189 = pneg %p46
        %p190 = pneg %p43
        %p191 = scmp.lt.s32.totalorder %s23, 1
        %s192 = scalar_select %p191, %s23, 1
        %s193 = smul.addr %s192, 8
        %s194 = scalar_lea.vmem %s1, %s193
        %p195 = pneg %p72
        %p196 = pneg %p69
        %p197 = scmp.lt.s32.totalorder %s22, 2
        %s198 = scalar_select %p197, %s22, 2
        %p199 = scmp.lt.s32.totalorder %s23, 1
        %s200 = scalar_select %p199, %s23, 1
        %s201 = smul.addr %s200, 2
        %s202 = smul.addr %s198, 4
        %s203 = sadd.s32 %s201, %s202
        %s204 = smul.addr %s203, 8
        %s205 = scalar_lea.vmem %s2, %s204
        %p206 = pneg %p100
        %p207 = pneg %p97
        %p208 = pneg %p128
        %p209 = pneg %p125
        %s210 = sand.u32 %s115, 1
        %s211 = scalar_lea.sflag [#allocation3], %s210
        %s212 = sand.u32 %s115, 1
        %s213 = smul.addr %s212, 8
        %s214 = scalar_lea.vmem [#allocation5], %s213
        %p215 = scmp.lt.s32.totalorder %s23, 1
        %s216 = scalar_select %p215, %s23, 1
        %s217 = smul.addr %s216, 8
        %s218 = scalar_lea.vmem %s1, %s217
        %p219 = scmp.lt.s32.totalorder %s22, 2
        %s220 = scalar_select %p219, %s22, 2
        %p221 = scmp.lt.s32.totalorder %s23, 1
        %s222 = scalar_select %p221, %s23, 1
        %s223 = smul.addr %s222, 2
        %s224 = smul.addr %s220, 4
        %s225 = sadd.s32 %s223, %s224
        %s226 = smul.addr %s225, 8
        %s227 = scalar_lea.vmem %s2, %s226
        %s228 = sld [smem:[#allocation2]]
        %s229 = sld [smem:[#allocation2 + $0x1]]
        %v230 = vld [vmem:[%s218] sm:$0xff]
        %v231 = vld [vmem:[%s227] sm:$0xff]
        %v232 = vld [vmem:[%s227 + $0x8] sm:$0xf]
        %234 = vset.pattern.permute.xlu0 0
        %235 = vperm.xlu0 %234, %v230
        %v236 = vpop.permute.xlu0 %235
        %v238 = vperm.slane %v231, 0
        %v239 = vsub.f32 %v236, %v238
        %v240 = vand.u32 2147483647, %v239
        %v241 = vadd.f32 %v240, 0.0
        %242 = vset.pattern.permute.xlu0 1
        %243 = vperm.xlu0 %242, %v230
        %v244 = vpop.permute.xlu0 %243
        %v246 = vperm.slane %v231, 1
        %v247 = vsub.f32 %v244, %v246
        %v248 = vand.u32 2147483647, %v247
        %v249 = vadd.f32 %v241, %v248
        %250 = vset.pattern.permute.xlu0 2
        %251 = vperm.xlu0 %250, %v230
        %v252 = vpop.permute.xlu0 %251
        %v254 = vperm.slane %v231, 2
        %v255 = vsub.f32 %v252, %v254
        %v256 = vand.u32 2147483647, %v255
        %v257 = vadd.f32 %v249, %v256
        %v258 = vmul.f32 %v257, -0.033333335
        %v259 = vmul.f32 %v258, 1.442695
        %v260 = vpow.pop %v259
        %v261 = vsub.f32 1.0, %v260
        %v262 = vlaneseq
        %v263 = vand.u32 %v262, 127
        %vm264 = vcmp.ge.s32.totalorder %v263, 3
        %vm265 = vcmp.le.s32.totalorder %v263, 4
        %vm266 = vmand %vm264, %vm265
        %v267 = vsel %vm266, %v230, 0.0
        %vm268 = vcmask 97280
        %v270 = vsel %vm268, %v267, 0
        %vm272 = vcmask 1043456
        %v274 = vsel %vm272, %v232, 0
        %276 = vmatpush.msra.mxu0 0.0
        %277 = vmatpush.msra.mxu0 0.0
        %278 = vmatpush.msra.mxu0 0.0
        %279 = vmatpush.msra.mxu0 0.0
        %280 = vmatpush.msra.mxu0 0.0
        %281 = vmatpush.msra.mxu0 0.0
        %282 = vmatpush.msra.mxu0 0.0
        %283 = vmatpush.msra.mxu0 0.0
        %284 = vmatpush.msra.mxu0 0.0
        %285 = vmatpush.msra.mxu0 0.0
        %286 = vmatpush.msra.mxu0 0.0
        %287 = vmatpush.msra.mxu0 0.0
        %288 = vmatpush.msra.mxu0 0.0
        %289 = vmatpush.msra.mxu0 0.0
        %290 = vmatpush.msra.mxu0 %v274
        %291 = vmatpush.msra.mxu0 %v231
        %292 = vmatmul.f32.gmra.mxu0 %v270
        %v293 = vpop.f32.mrf.mxu0
        %v294 = vadd.f32 0.0, %v293
        %295 = vdwg.mxu0
        %v296 = vmul.f32 %v267, %v267
        %v297 = vsel %vm268, %v296, 0.0
        %298 = vadd.xlane.f32.xlu0 %v297
        %v299 = vpop.xlane.xlu0 %298
        %v300 = vmul.f32 %v231, %v231
        %v302 = vrot.slane %v300, 3
        %vm304 = vcmask 1041408
        %v305 = vsel %vm304, %v302, 0.0
        %v306 = vrot.slane %v305, 4
        %v307 = vadd.f32 %v305, %v306
        %v308 = vrot.slane %v307, 2
        %v309 = vadd.f32 %v307, %v308
        %v310 = vrot.slane %v309, 1
        %v311 = vadd.f32 %v309, %v310
        %v312 = vadd.f32 %v299, %v311
        %v313 = vmul.f32 %v294, 2.0
        %v314 = vsub.f32 %v312, %v313
        %v315 = vmax.f32 %v314, 0.0
        %v316 = vrsqrt.pop %v315
        %v317 = vmul.f32 %v316, %v315
        %v318 = vmul.f32 %v317, %v316
        %v319 = vmul.f32 0.5, %v318
        %v320 = vsub.f32 1.5, %v319
        %v321 = vmul.f32 %v316, %v320
        %v322 = vmul.f32 %v315, %v321
        %vm323 = vcmp.eq.f32.partialorder %v315, inf
        %v324 = vsel %vm323, %v315, %v322
        %vm325 = vcmp.eq.f32.partialorder %v315, 0.0
        %v326 = vand.u32 %v315, 2147483648
        %v327 = vsel %vm325, %v326, %v324
        %v328 = vsub.f32 %v327, 2.0
        %v329 = vmul.f32 %v328, 10.0
        %v330 = vtanh.pop %v329
        %v331 = vadd.f32 %v330, 1.0
        %v332 = vmul.f32 %v331, 0.5
        %vm333 = vcmp.ge.s32.totalorder %v263, 8
        %vm334 = vcmp.le.s32.totalorder %v263, 10
        %vm335 = vmand %vm333, %vm334
        %v336 = vsel %vm335, %v230, 0.0
        %v338 = vsel %vm268, %v336, 0
        %340 = vmatpush.msra.mxu0 0.0
        %341 = vmatpush.msra.mxu0 0.0
        %342 = vmatpush.msra.mxu0 0.0
        %343 = vmatpush.msra.mxu0 0.0
        %344 = vmatpush.msra.mxu0 0.0
        %345 = vmatpush.msra.mxu0 0.0
        %346 = vmatpush.msra.mxu0 0.0
        %347 = vmatpush.msra.mxu0 0.0
        %348 = vmatpush.msra.mxu0 0.0
        %349 = vmatpush.msra.mxu0 0.0
        %350 = vmatpush.msra.mxu0 0.0
        %351 = vmatpush.msra.mxu0 0.0
        %352 = vmatpush.msra.mxu0 0.0
        %353 = vmatpush.msra.mxu0 0.0
        %354 = vmatpush.msra.mxu0 %v274
        %355 = vmatpush.msra.mxu0 %v231
        %356 = vmatmul.f32.gmra.mxu0 %v338
        %v357 = vpop.f32.mrf.mxu0
        %v358 = vadd.f32 0.0, %v357
        %359 = vdwg.mxu0
        %v360 = vmul.f32 %v336, %v336
        %v361 = vsel %vm268, %v360, 0.0
        %362 = vadd.xlane.f32.xlu0 %v361
        %v363 = vpop.xlane.xlu0 %362
        %v364 = vmul.f32 %v232, %v232
        %vm365 = vcmask 1042432
        %v366 = vsel %vm365, %v364, 0.0
        %v367 = vrot.slane %v366, 4
        %v368 = vadd.f32 %v366, %v367
        %v369 = vrot.slane %v368, 2
        %v370 = vadd.f32 %v368, %v369
        %v371 = vrot.slane %v370, 1
        %v372 = vadd.f32 %v370, %v371
        %v373 = vadd.f32 %v363, %v372
        %v374 = vmul.f32 %v358, 2.0
        %v375 = vsub.f32 %v373, %v374
        %v376 = vmax.f32 %v375, 0.0
        %v377 = vrsqrt.pop %v376
        %v378 = vmul.f32 %v377, %v376
        %v379 = vmul.f32 %v378, %v377
        %v380 = vmul.f32 0.5, %v379
        %v381 = vsub.f32 1.5, %v380
        %v382 = vmul.f32 %v377, %v381
        %v383 = vmul.f32 %v376, %v382
        %vm384 = vcmp.eq.f32.partialorder %v376, inf
        %v385 = vsel %vm384, %v376, %v383
        %vm386 = vcmp.eq.f32.partialorder %v376, 0.0
        %v387 = vand.u32 %v376, 2147483648
        %v388 = vsel %vm386, %v387, %v385
        %v389 = vsub.f32 %v388, 2.0
        %v390 = vmul.f32 %v389, 10.0
        %v391 = vtanh.pop %v390
        %v392 = vadd.f32 %v391, 1.0
        %v393 = vmul.f32 %v392, 0.5
        %v394 = vmul.f32 %v261, 0.7
        %v395 = vmul.f32 %v332, 0.2
        %v396 = vadd.f32 %v394, %v395
        %v397 = vmul.f32 %v393, 0.1
        %v398 = vadd.f32 %v396, %v397
        %v399 = vand.u32 2147483647, %v232
        %v400 = vsub.f32 0.0, %v399
        %v401 = vmul.f32 %v400, 1.442695
        %v402 = vpow.pop %v401
        %v403 = vadd.f32 %v402, 1.0
        %v404 = vrcp.pop %v403
        %vm405 = vcmp.ge.f32.partialorder %v232, 0.0
        %v406 = vmul.f32 %v402, %v404
        %v407 = vsel %vm405, %v404, %v406
        %v408 = vmax.f32 %v232, 0.0
        %v409 = vlog2.pop %v403
        %v410 = vmul.f32 %v409, 0.6931472
        %v411 = vadd.f32 %v408, %v410
        %v412 = vmul.f32 %v407, %v407
        %v413 = vmul.f32 %v412, 0.75
        %v414 = vmul.f32 %v413, %v411
        %v415 = vsub.f32 1.0, %v407
        %v416 = vmul.f32 %v415, 0.25
        %v417 = vmul.f32 %v416, %v415
        %v418 = vsub.f32 %v411, %v232
        %v419 = vmul.f32 %v417, %v418
        %vm420 = vcmp.eq.f32.partialorder %v230, 1.0
        %v421 = vsel %vm420, 1, 0
        %422 = vset.pattern.permute.xlu0 11
        %423 = vperm.xlu0 %422, %v421
        %v424 = vpop.permute.xlu0 %423
        %vm425 = vcmp.eq.s32.totalorder %v424, 1
        %v426 = vperm.slane %v419, 3
        %v427 = vperm.slane %v414, 3
        %v428 = vsel %vm425, %v426, %v427
        %v429 = vstv %s228
        %v430 = vmul.f32 %v428, %v429
        %v431 = vstv %s229
        %v432 = vmul.f32 %v398, %v431
        %v433 = vadd.f32 %v430, %v432
        %434 = vst [vmem:[%s214] sm:$0xff] %v433
        %s435 = sand.u32 %s115, 1
        %s436 = scalar_lea.sflag [#allocation3], %s435
        %s437 = sand.u32 %s115, 1
        %s438 = smul.addr %s437, 8
        %s439 = scalar_lea.vmem [#allocation5], %s438
        // Predicated region
        $region37: #{tpu_custom_call.1} parent=31 // pred_check
          %p440 = pneg %p125
        $region38: #{tpu_custom_call.1} parent=31 // pred_check_branch
          %442 = sbr.rel (%p440) target = $region40
        $region39: #{tpu_custom_call.1} parent=31 // pred_region
          %444 = vsyncadd %s436, 0
          %s445 = smul.addr %s22, 2
          %s446 = sadd.s32 %s23, %s445
          %s447 = smul.addr %s446, 8
          %s448 = scalar_lea.hbm %s3, %s447
          %s450 = sshll.u32 %s439, 4
          %s451 = int_to_ptr.vmem [resolvable:$true] %s450
          %s452 = sshll.u32 %s448, 4
          %s453 = int_to_ptr.hbm [resolvable:$true] %s452
          %455 = dma.vmem_to_hbm [thread:$0]  %s451, 128, %s453, %s436
        $region40: #{tpu_custom_call.1} parent=31 // pred_fallthru
          _
      $region32: #{tpu_custom_call.1} parent=5 // pred_fallthru
        _
      %p456 = scmp.le.s32.totalorder 2, %s13
      // Predicated region
      $region41: #{tpu_custom_call.1} parent=5 // pred_check
        %p457 = pneg %p456
      $region42: #{tpu_custom_call.1} parent=5 // pred_check_branch
        %459 = sbr.rel (%p457) target = $region44
      $region43: #{tpu_custom_call.1} parent=5 // pred_region
        %s460 = ssub.s32 %s13, 2
        // Predicated region
        $region45: #{tpu_custom_call.1} parent=43 // pred_check
          %p461 = pneg %p131
        $region46: #{tpu_custom_call.1} parent=43 // pred_check_branch
          %463 = sbr.rel (%p461) target = $region48
        $region47: #{tpu_custom_call.1} parent=43 // pred_region
          %s464 = sand.u32 %s116, 1
          %s465 = scalar_lea.sflag [#allocation3], %s464
          %s466 = sand.u32 %s116, 1
          %s467 = smul.addr %s466, 8
          %s468 = scalar_lea.vmem [#allocation5], %s467
          %470 = dma.done %s465, 128
        $region48: #{tpu_custom_call.1} parent=43 // pred_fallthru
          _
      $region44: #{tpu_custom_call.1} parent=5 // pred_fallthru
        _
    $region6: #{tpu_custom_call.1} parent=1 // loop_footer
      %s17 = sadd.s32 1, %s13
    $region7: #{tpu_custom_call.1} parent=1 // loop_footer_branch
      %12 = sbr.rel target = $region3
    $region8: #{tpu_custom_call.1} parent=1 // loop_exit
      _
    %471 = vsyncpa [#allocation3], 1
    %s472 = scalar_lea.sflag [#allocation3], 1
    %473 = vsyncpa %s472, 1
    %474 = vsyncpa [#allocation4], 1
    %s475 = scalar_lea.sflag [#allocation4], 1
    %476 = vsyncpa %s475, 1

</llo_original>
